<compile_context>
chip_gen: v7x
topology: tpu7x:2x2x1
jax: 0.10.0
libtpu: 0.0.40
codegen_flags: <defaults>
</compile_context>

<pallas_src>
import functools

import jax
import jax.numpy as jnp
from jax.experimental import pallas as pl
from jax.experimental.pallas import tpu as pltpu

_MIB = 1024 * 1024


# ---------------------------------------------------------------------------
# Kernels
# ---------------------------------------------------------------------------
def _rmsnorm_kernel(x_ref, w_ref, o_ref, *, eps: float, native_scale: bool):
    """Plain path: the whole feature axis lives in one lane-dense block."""
    x = x_ref[...]
    xf = x.astype(jnp.float32)
    ms = jnp.mean(xf * xf, axis=-1, keepdims=True)      # XLU cross-lane reduce
    inv = jax.lax.rsqrt(ms + eps)                       # EUP transcendental
    if native_scale:
        # bf16 VALU path (v6e / v7x): reuse the native-dtype input; only the
        # tiny [rows, 1] inverse norm is cast. No full-size f32 `y` temp.
        o_ref[...] = (x * inv.astype(x.dtype) * w_ref[...]).astype(o_ref.dtype)
    else:
        o_ref[...] = (xf * inv * w_ref[...].astype(jnp.float32)).astype(o_ref.dtype)


def _rmsnorm_folded_kernel(x_ref, w_ref, seg_ref, o_ref, *, eps: float,
                           inv_d: float, native_scale: bool):
    """Lane-folded path for d_model < 128: `fold` rows share the 128-lane axis.

    Per-segment sum of squares = (x*x) @ seg, where seg is a block-diagonal
    0/1 matrix (MXU). Everything stays lane-dense, stores are unmasked.
    """
    x = x_ref[...]
    xf = x.astype(jnp.float32)
    seg_sum = jnp.dot(xf * xf, seg_ref[...], preferred_element_type=jnp.float32)
    inv = jax.lax.rsqrt(seg_sum * inv_d + eps)
    if native_scale:
        o_ref[...] = (x * inv.astype(x.dtype) * w_ref[...]).astype(o_ref.dtype)
    else:
        o_ref[...] = (xf * inv * w_ref[...].astype(jnp.float32)).astype(o_ref.dtype)


# ---------------------------------------------------------------------------
# Helpers
# ---------------------------------------------------------------------------
def _vmem_capacity_bytes() -> int:
    """Per-TensorCore VMEM capacity; conservative fallback (v7x = 64 MiB)."""
    try:
        return int(pltpu.get_tpu_info().vmem_capacity_bytes)
    except Exception:
        return 64 * _MIB


def _has_bf16_valu() -> bool:
    """v6e / v7x have bf16-native VALUs; v5e and older do not."""
    try:
        kind = jax.devices()[0].device_kind.lower()
    except Exception:
        return True
    return not any(tag in kind for tag in ("v2", "v3", "v4", "v5"))


# ---------------------------------------------------------------------------
# Wrapper
# ---------------------------------------------------------------------------
def rmsnorm(activation: jax.Array, weight: jax.Array, eps: float = 1e-5,
            block_rows: int | None = None) -> jax.Array:
    """RMSNorm over the last axis of `activation`, scaled by `weight`."""
    orig_shape = activation.shape
    d_model = orig_shape[-1]
    assert weight.shape == (d_model,)

    x2d = activation.reshape(-1, d_model)
    rows = x2d.shape[0]
    act_dtype = activation.dtype
    itemsize = jnp.dtype(act_dtype).itemsize
    # Sublane packing: 8 rows (f32), 16 (bf16), 32 (int8/fp8).
    sublane = max(8, 32 // itemsize)

    native_scale = (act_dtype == jnp.bfloat16) and _has_bf16_valu()

    # ---- lane packing for narrow features (d_model < 128) ------------------
    fold = 1
    if d_model < 128 and 128 % d_model == 0 and rows % (128 // d_model) == 0:
        fold = 128 // d_model
    L = fold * d_model                       # effective (lane) last dim
    rows_eff = rows // fold
    if fold > 1:
        x2d = x2d.reshape(rows_eff, L)
        w_eff = jnp.tile(weight, fold)
        lane = jnp.arange(L)
        seg = (lane[:, None] // d_model == lane[None, :] // d_model)
        seg = seg.astype(jnp.float32)
    else:
        w_eff = weight
        seg = None

    w_kernel = w_eff.astype(act_dtype if native_scale else jnp.float32)
    w2d = w_kernel.reshape(1, L)

    # ---- tile sizing --------------------------------------------------------
    vmem_cap = _vmem_capacity_bytes()
    # Per-row footprint: double-buffered input + output blocks plus in-kernel
    # f32 temporaries (upcast x, x*x, scale product).
    per_row_bytes = L * (2 * itemsize + 2 * itemsize + 3 * 4)
    if block_rows is None:
        rows_from_vmem = int(vmem_cap * 0.55) // per_row_bytes
        # Bytes-based tile target (~8 MiB HBM-facing blocks, >=85% of roofline
        # per the tile-size sweep), independent of d_model.
        rows_from_bytes = (8 * _MIB) // max(1, L * itemsize)
        block_rows = max(sublane, min(rows_from_vmem, rows_from_bytes))
        # Keep >= 2 (prefer >= 4) grid steps so DMA-in / compute / DMA-out
        # pipeline and both v7x TensorCores get work.
        if rows_eff >= 2 * sublane:
            min_steps = 4 if rows_eff >= 4 * sublane else 2
            cap = -(-rows_eff // min_steps)                  # ceil
            cap = -(-cap // sublane) * sublane               # round up to sublane
            block_rows = min(block_rows, cap)

    if block_rows >= rows_eff:
        # Single full-extent block (tiny inputs only) — exempt from the
        # 8-sublane divisibility rule since it equals the array dim.
        block_rows = rows_eff
    else:
        block_rows = max(sublane, (block_rows // sublane) * sublane)

    # Ragged tail handled by Pallas masking — no host-side pad/slice copy.
    grid = (pl.cdiv(rows_eff, block_rows),)

    # ---- scoped VMEM limit (buffers + f32 temporaries) ----------------------
    block_bytes = block_rows * L * itemsize
    temps_bytes = 3 * block_rows * L * 4
    w_bytes = L * jnp.dtype(w2d.dtype).itemsize
    seg_bytes = (L * L * 4) if fold > 1 else 0
    needed = 4 * block_bytes + temps_bytes + 2 * w_bytes + 2 * seg_bytes + 2 * _MIB
    vmem_limit = int(min(vmem_cap * 0.9, max(needed, 32 * _MIB)))

    cost = pl.CostEstimate(
        flops=int(4 * rows * d_model + (2 * rows_eff * L * L if fold > 1 else 0)),
        transcendentals=int(rows),
        bytes_accessed=int(2 * rows * d_model * itemsize + w_bytes + seg_bytes))

    x_spec = pl.BlockSpec((block_rows, L), lambda i: (i, 0))
    w_spec = pl.BlockSpec((1, L), lambda i: (0, 0))
    o_spec = pl.BlockSpec((block_rows, L), lambda i: (i, 0))
    compiler_params = pltpu.CompilerParams(
        dimension_semantics=("parallel",), vmem_limit_bytes=vmem_limit)
    out_shape = jax.ShapeDtypeStruct((rows_eff, L), act_dtype)

    if fold > 1:
        seg_spec = pl.BlockSpec((L, L), lambda i: (0, 0))
        out2d = pl.pallas_call(
            functools.partial(_rmsnorm_folded_kernel, eps=eps,
                              inv_d=1.0 / d_model, native_scale=native_scale),
            out_shape=out_shape,
            grid_spec=pltpu.PrefetchScalarGridSpec(
                num_scalar_prefetch=0, grid=grid,
                in_specs=[x_spec, w_spec, seg_spec], out_specs=o_spec),
            compiler_params=compiler_params,
            cost_estimate=cost,
        )(x2d, w2d, seg)
    else:
        out2d = pl.pallas_call(
            functools.partial(_rmsnorm_kernel, eps=eps, native_scale=native_scale),
            out_shape=out_shape,
            grid_spec=pltpu.PrefetchScalarGridSpec(
                num_scalar_prefetch=0, grid=grid,
                in_specs=[x_spec, w_spec], out_specs=o_spec),
            compiler_params=compiler_params,
            cost_estimate=cost,
        )(x2d, w2d)

    return out2d.reshape(orig_shape)


def _reference(x, weight, eps):
    xf = x.astype(jnp.float32)
    wf = weight.astype(jnp.float32)
    norm = jnp.sqrt(jnp.mean(xf * xf, axis=-1, keepdims=True) + eps)
    return xf / norm * wf


if __name__ == "__main__":
    key = jax.random.PRNGKey(0)
    k1, k2, k3, kw = jax.random.split(key, 4)

    # --- Test 1: small f32, d_model=32 — exercises the lane-folded path ------
    batch, seq, d_model = 2, 8, 32
    x = jax.random.normal(k1, (batch, seq, d_model), dtype=jnp.float32)
    weight = (jnp.ones((d_model,), dtype=jnp.float32)
              + 0.01 * jax.random.normal(kw, (d_model,), dtype=jnp.float32))
    out = jax.block_until_ready(rmsnorm(x, weight, eps=1e-5))
    ref = _reference(x, weight, 1e-5)
    assert out.shape == x.shape
    assert jnp.allclose(out, ref, atol=1e-5, rtol=1e-5), "f32 small mismatch"

    # --- Test 2: bf16 activation, lane-dense d_model=256 — native bf16 scale
    #     path on v6e/v7x, f32 path on v5e --------------------------------------
    d2 = 256
    x_bf16 = jax.random.normal(k2, (batch, seq, d2), jnp.float32).astype(jnp.bfloat16)
    w2 = jnp.ones((d2,), dtype=jnp.float32)
    out_bf16 = jax.block_until_ready(rmsnorm(x_bf16, w2, eps=1e-5))
    assert out_bf16.dtype == jnp.bfloat16
    ref_bf16 = _reference(x_bf16, w2, 1e-5)
    assert jnp.allclose(out_bf16.astype(jnp.float32), ref_bf16,
                        atol=3e-2, rtol=3e-2), "bf16 mismatch"

    # --- Test 3: ragged row count (21 rows, forced small tiles) — masked-tail
    #     path -----------------------------------------------------------------
    x_rag = jax.random.normal(k3, (3, 7, 128), dtype=jnp.float32)
    w3 = jnp.ones((128,), dtype=jnp.float32)
    out_rag = jax.block_until_ready(rmsnorm(x_rag, w3, eps=1e-5, block_rows=8))
    ref_rag = _reference(x_rag, w3, 1e-5)
    assert jnp.allclose(out_rag, ref_rag, atol=1e-5, rtol=1e-5), "ragged-rows mismatch"

    print("KERNEL_OK")
</pallas_src>

<mosaic_0001>
module attributes {stable_mosaic.version = 11 : i64} {
  func.func @_rmsnorm_folded_kernel(%arg0: i32, %arg1: memref<4x128xf32, #tpu.memory_space<vmem>>, %arg2: memref<1x128xf32, #tpu.memory_space<vmem>>, %arg3: memref<128x128xf32, #tpu.memory_space<vmem>>, %arg4: memref<4x128xf32, #tpu.memory_space<vmem>>) attributes {dimension_semantics = [#tpu.dimension_semantics<parallel>], iteration_bounds = array<i64: 1>, scalar_prefetch = 0 : i64, scratch_operands = 0 : i64, tpu.core_type = #tpu.core_type<tc>, window_params = [{transform_indices = @transform_0, window_bounds = array<i64: 4, 128>}, {pipeline_mode = #tpu.pipeline_mode<synchronous>, transform_indices = @transform_1, window_bounds = array<i64: 1, 128>}, {pipeline_mode = #tpu.pipeline_mode<synchronous>, transform_indices = @transform_2, window_bounds = array<i64: 128, 128>}, {transform_indices = @transform_3, window_bounds = array<i64: 4, 128>}]} {
    %c0 = arith.constant 0 : index
    %c0_0 = arith.constant 0 : index
    %0 = vector.load %arg1[%c0, %c0_0] : memref<4x128xf32, #tpu.memory_space<vmem>>, vector<4x128xf32>
    %1 = arith.mulf %0, %0 : vector<4x128xf32>
    %c0_1 = arith.constant 0 : index
    %c0_2 = arith.constant 0 : index
    %2 = vector.load %arg3[%c0_1, %c0_2] : memref<128x128xf32, #tpu.memory_space<vmem>>, vector<128x128xf32>
    %cst = arith.constant dense<0.000000e+00> : vector<4x128xf32>
    %3 = tpu.matmul %1, %2, %cst {dimension_numbers = #tpu.dot_dimension_numbers<[1], [0], [0], [1], [0, 0, 1, 1], [], []>} : vector<4x128xf32>, vector<128x128xf32>, vector<4x128xf32> -> vector<4x128xf32>
    %cst_3 = arith.constant 3.125000e-02 : f32
    %4 = vector.broadcast %cst_3 : f32 to vector<4x128xf32>
    %5 = arith.mulf %3, %4 : vector<4x128xf32>
    %cst_4 = arith.constant 9.99999974E-6 : f32
    %6 = vector.broadcast %cst_4 : f32 to vector<4x128xf32>
    %7 = arith.addf %5, %6 : vector<4x128xf32>
    %8 = math.rsqrt %7 : vector<4x128xf32>
    %9 = arith.mulf %0, %8 : vector<4x128xf32>
    %c0_5 = arith.constant 0 : index
    %c0_6 = arith.constant 0 : index
    %10 = vector.load %arg2[%c0_5, %c0_6] : memref<1x128xf32, #tpu.memory_space<vmem>>, vector<1x128xf32>
    %11 = vector.broadcast %10 : vector<1x128xf32> to vector<4x128xf32>
    %12 = arith.mulf %9, %11 : vector<4x128xf32>
    %c0_7 = arith.constant 0 : index
    %c0_8 = arith.constant 0 : index
    %13 = vector.load %arg4[%c0_7, %c0_8] : memref<4x128xf32, #tpu.memory_space<vmem>>, vector<4x128xf32>
    tpu.vector_store %arg4[%c0_7, %c0_8], %12 {strides = array<i32>} : memref<4x128xf32, #tpu.memory_space<vmem>>, vector<4x128xf32>,
    return
  }
  func.func @transform_0(%arg0: i32) -> (i32, i32) {
    %c0_i32 = arith.constant 0 : i32
    %c0_i32_0 = arith.constant 0 : i32
    return %arg0, %c0_i32 : i32, i32
  }
  func.func @transform_1(%arg0: i32) -> (i32, i32) {
    %c0_i32 = arith.constant 0 : i32
    %c0_i32_0 = arith.constant 0 : i32
    %c0_i32_1 = arith.constant 0 : i32
    return %c0_i32, %c0_i32_0 : i32, i32
  }
  func.func @transform_2(%arg0: i32) -> (i32, i32) {
    %c0_i32 = arith.constant 0 : i32
    %c0_i32_0 = arith.constant 0 : i32
    %c0_i32_1 = arith.constant 0 : i32
    return %c0_i32, %c0_i32_0 : i32, i32
  }
  func.func @transform_3(%arg0: i32) -> (i32, i32) {
    %c0_i32 = arith.constant 0 : i32
    %c0_i32_0 = arith.constant 0 : i32
    return %arg0, %c0_i32 : i32, i32
  }
}

</mosaic_0001>

<llo_original>
// kernel: tpu_custom_call.1
$region0: #{tpu_custom_call.1}
  #allocation0 [shape = 'u32[]', space=smem, size = 0x4, offset = 0x4, fixed_abs, tag = 'smem constant byte address 0x4 - core index']
  #allocation1 [shape = 'u32[144,128]{1,0:T(1,128)}', space=vmem, size = 0x12000, scoped, tag = 'internal scratch']
  %s0 = inlined_call_operand.hbm [shape: f32[4,128], index: 0, kind: input, shape index: {}]
  %s1 = inlined_call_operand.vmem [shape: f32[1,128], index: 1, kind: input, shape index: {}]
  %s2 = inlined_call_operand.hbm [shape: f32[128,128], index: 2, kind: input, shape index: {}]
  %s3 = inlined_call_operand.hbm [shape: f32[4,128], index: 3, kind: output, shape index: {}]
  %s4 = sld [smem:[#allocation0]]
  $region30: #{tpu_custom_call.1} parent=0
    _
  %s6 = ssub.s32 1, %s4
  %s7 = scalar_select 0, %s6, %s4
  $region1: #{tpu_custom_call.1} parent=0
    #allocation2 [shape = 'u8[2048]{0}', space=vmem, size = 0x800, scoped, tag = 'input window, operand 0, single buffered']
    #allocation3 [shape = 's32[1]{0}', space=sflag, size = 0x4, scoped, tag = 'scoped memory for tpu_custom_call.1']
    #allocation4 [shape = 's32[1]{0}', space=sflag, size = 0x4, scoped, tag = 'scoped memory for tpu_custom_call.1']
    #allocation5 [shape = 'u8[65536]{0}', space=vmem, size = 0x10000, scoped, tag = 'input window, operand 2, single buffered']
    #allocation6 [shape = 's32[1]{0}', space=sflag, size = 0x4, scoped, tag = 'scoped memory for tpu_custom_call.1']
    #allocation7 [shape = 'u8[2048]{0}', space=vmem, size = 0x800, scoped, tag = 'output window, operand 0, single buffered']
    %8 = vsyncpa [#allocation3], 0
    %9 = vsyncpa [#allocation6], 0
    %10 = vsyncpa [#allocation4], 0
    // Predicated region
    $region2: #{tpu_custom_call.1} parent=1 // pred_check
      _
    $region3: #{tpu_custom_call.1} parent=1 // pred_check_branch
      %12 = sbr.rel (0) target = $region5
    $region4: #{tpu_custom_call.1} parent=1 // pred_region
      %s14 = ssub.s32 64, 64
      %15 = vsyncadd [#allocation3], %s14
      %s17 = sshll.u32 [#allocation2], 4
      %s18 = int_to_ptr.vmem [resolvable:$true] %s17
      %20 = dma.hbm_to_vmem [thread:$0]  %s0, 64, %s18, [#allocation3]
    $region5: #{tpu_custom_call.1} parent=1 // pred_fallthru
      _
    // Predicated region
    $region6: #{tpu_custom_call.1} parent=1 // pred_check
      _
    $region7: #{tpu_custom_call.1} parent=1 // pred_check_branch
      %22 = sbr.rel (0) target = $region9
    $region8: #{tpu_custom_call.1} parent=1 // pred_region
      _
    $region9: #{tpu_custom_call.1} parent=1 // pred_fallthru
      _
    // Predicated region
    $region10: #{tpu_custom_call.1} parent=1 // pred_check
      _
    $region11: #{tpu_custom_call.1} parent=1 // pred_check_branch
      %24 = sbr.rel (0) target = $region13
    $region12: #{tpu_custom_call.1} parent=1 // pred_region
      %s26 = ssub.s32 2048, 2048
      %27 = vsyncadd [#allocation6], %s26
      %s28 = sshll.u32 [#allocation5], 4
      %s29 = int_to_ptr.vmem [resolvable:$true] %s28
      %34 = dma.hbm_to_vmem [thread:$0]  %s2, 2048, %s29, [#allocation6], 128, 128, 8
    $region13: #{tpu_custom_call.1} parent=1 // pred_fallthru
      _
    // Predicated region
    $region14: #{tpu_custom_call.1} parent=1 // pred_check
      _
    $region15: #{tpu_custom_call.1} parent=1 // pred_check_branch
      %36 = sbr.rel (0) target = $region17
    $region16: #{tpu_custom_call.1} parent=1 // pred_region
      %37 = dma.done [#allocation3], 64
    $region17: #{tpu_custom_call.1} parent=1 // pred_fallthru
      _
    // Predicated region
    $region18: #{tpu_custom_call.1} parent=1 // pred_check
      _
    $region19: #{tpu_custom_call.1} parent=1 // pred_check_branch
      %39 = sbr.rel (0) target = $region21
    $region20: #{tpu_custom_call.1} parent=1 // pred_region
      %40 = dma.done [#allocation6], 2048
    $region21: #{tpu_custom_call.1} parent=1 // pred_fallthru
      _
    %v41 = vld [vmem:[#allocation2] sm:$0xf]
    %v42 = vmul.f32 %v41, %v41
    %v43 = vld [vmem:[#allocation5] sm:$0xff]
    %v44 = vld [vmem:[#allocation5 + $0x8] sm:$0xff]
    %v45 = vld [vmem:[#allocation5 + $0x10] sm:$0xff]
    %v46 = vld [vmem:[#allocation5 + $0x18] sm:$0xff]
    %v47 = vld [vmem:[#allocation5 + $0x20] sm:$0xff]
    %v48 = vld [vmem:[#allocation5 + $0x28] sm:$0xff]
    %v49 = vld [vmem:[#allocation5 + $0x30] sm:$0xff]
    %v50 = vld [vmem:[#allocation5 + $0x38] sm:$0xff]
    %v51 = vld [vmem:[#allocation5 + $0x40] sm:$0xff]
    %v52 = vld [vmem:[#allocation5 + $0x48] sm:$0xff]
    %v53 = vld [vmem:[#allocation5 + $0x50] sm:$0xff]
    %v54 = vld [vmem:[#allocation5 + $0x58] sm:$0xff]
    %v55 = vld [vmem:[#allocation5 + $0x60] sm:$0xff]
    %v56 = vld [vmem:[#allocation5 + $0x68] sm:$0xff]
    %v57 = vld [vmem:[#allocation5 + $0x70] sm:$0xff]
    %v58 = vld [vmem:[#allocation5 + $0x78] sm:$0xff]
    %59 = vmatprep.subr.mxu0 0.0
    %60 = vmatpush1.msra.mxu0 %v43
    %61 = vmatprep.subr.mxu0 0.0
    %62 = vmatpush1.msra.mxu0 %v44
    %63 = vmatprep.subr.mxu0 0.0
    %64 = vmatpush1.msra.mxu0 %v45
    %65 = vmatprep.subr.mxu0 0.0
    %66 = vmatpush1.msra.mxu0 %v46
    %67 = vmatprep.subr.mxu0 0.0
    %68 = vmatpush1.msra.mxu0 %v47
    %69 = vmatprep.subr.mxu0 0.0
    %70 = vmatpush1.msra.mxu0 %v48
    %71 = vmatprep.subr.mxu0 0.0
    %72 = vmatpush1.msra.mxu0 %v49
    %73 = vmatprep.subr.mxu0 0.0
    %74 = vmatpush1.msra.mxu0 %v50
    %75 = vmatprep.subr.mxu0 0.0
    %76 = vmatpush1.msra.mxu0 %v51
    %77 = vmatprep.subr.mxu0 0.0
    %78 = vmatpush1.msra.mxu0 %v52
    %79 = vmatprep.subr.mxu0 0.0
    %80 = vmatpush1.msra.mxu0 %v53
    %81 = vmatprep.subr.mxu0 0.0
    %82 = vmatpush1.msra.mxu0 %v54
    %83 = vmatprep.subr.mxu0 0.0
    %84 = vmatpush1.msra.mxu0 %v55
    %85 = vmatprep.subr.mxu0 0.0
    %86 = vmatpush1.msra.mxu0 %v56
    %87 = vmatprep.subr.mxu0 0.0
    %88 = vmatpush1.msra.mxu0 %v57
    %89 = vmatprep.subr.mxu0 0.0
    %90 = vmatpush1.msra.mxu0 %v58
    %91 = vmatprep.subr.mxu0 0.0
    %92 = vmatpush1.msra.mxu0 0.0
    %93 = vmatprep.subr.mxu0 0.0
    %94 = vmatpush1.msra.mxu0 0.0
    %95 = vmatprep.subr.mxu0 0.0
    %96 = vmatpush1.msra.mxu0 0.0
    %97 = vmatprep.subr.mxu0 0.0
    %98 = vmatpush1.msra.mxu0 0.0
    %99 = vmatprep.subr.mxu0 0.0
    %100 = vmatpush1.msra.mxu0 0.0
    %101 = vmatprep.subr.mxu0 0.0
    %102 = vmatpush1.msra.mxu0 0.0
    %103 = vmatprep.subr.mxu0 0.0
    %104 = vmatpush1.msra.mxu0 0.0
    %105 = vmatprep.subr.mxu0 0.0
    %106 = vmatpush1.msra.mxu0 0.0
    %107 = vmatprep.subr.mxu0 0.0
    %108 = vmatpush1.msra.mxu0 0.0
    %109 = vmatprep.subr.mxu0 0.0
    %110 = vmatpush1.msra.mxu0 0.0
    %111 = vmatprep.subr.mxu0 0.0
    %112 = vmatpush1.msra.mxu0 0.0
    %113 = vmatprep.subr.mxu0 0.0
    %114 = vmatpush1.msra.mxu0 0.0
    %115 = vmatprep.subr.mxu0 0.0
    %116 = vmatpush1.msra.mxu0 0.0
    %117 = vmatprep.subr.mxu0 0.0
    %118 = vmatpush1.msra.mxu0 0.0
    %119 = vmatprep.subr.mxu0 0.0
    %120 = vmatpush1.msra.mxu0 0.0
    %121 = vmatprep.subr.mxu0 0.0
    %122 = vmatpush1.msra.mxu0 0.0
    %123 = vmatprep.mubr.f32.mxu0 0.0
    %124 = vmatmul.mubr.f32.gmra.mrb[0].mxu0 %v42
    %v125 = vpop.f32.mrb[0].mxu0
    %v126 = vadd.f32 0.0, %v125
    %v127 = vpop.f32.mrb[0].mxu0
    %128 = vdwg.mxu0
    %v129 = vmul.f32 %v126, 0.03125
    %v130 = vadd.f32 %v129, 1e-05
    %v131 = vrsqrt.pop %v130
    %v132 = vmul.f32 %v41, %v131
    %v133 = vld [vmem:[%s1] sm:$0x1]
    %v135 = vlaneseq
    %v136 = vshrl.u32 %v135, 7
    %v137 = vsub.s32 0, %v136
    %v138 = vrot.slane %v133, %v137
    %v140 = vmul.f32 %v132, %v138
    %141 = vst [vmem:[#allocation7] sm:$0xf] %v140
    // Predicated region
    $region22: #{tpu_custom_call.1} parent=1 // pred_check
      _
    $region23: #{tpu_custom_call.1} parent=1 // pred_check_branch
      %143 = sbr.rel (0) target = $region25
    $region24: #{tpu_custom_call.1} parent=1 // pred_region
      %s145 = ssub.s32 64, 64
      %146 = vsyncadd [#allocation4], %s145
      %s148 = sshll.u32 [#allocation7], 4
      %s149 = int_to_ptr.vmem [resolvable:$true] %s148
      %151 = dma.vmem_to_hbm [thread:$0]  %s149, 64, %s3, [#allocation4]
    $region25: #{tpu_custom_call.1} parent=1 // pred_fallthru
      _
    // Predicated region
    $region26: #{tpu_custom_call.1} parent=1 // pred_check
      _
    $region27: #{tpu_custom_call.1} parent=1 // pred_check_branch
      %153 = sbr.rel (0) target = $region29
    $region28: #{tpu_custom_call.1} parent=1 // pred_region
      %154 = dma.done [#allocation4], 64
    $region29: #{tpu_custom_call.1} parent=1 // pred_fallthru
      _
    %155 = vsyncpa [#allocation3], 1
    %156 = vsyncpa [#allocation6], 1
    %157 = vsyncpa [#allocation4], 1

</llo_original>
